<compile_context>
chip_gen: v5e
topology: v5e:2x2
jax: 0.10.0
libtpu: 0.0.40
codegen_flags: <defaults>
</compile_context>

<pallas_src>
import jax
import jax.numpy as jnp
from jax.experimental import pallas as pl
from jax.experimental.pallas import tpu as pltpu


def _round_up(v, m):
    return ((v + m - 1) // m) * m


def _guidance_kernel(x_ref, w1_ref, b1_ref, w2_ref, b2_ref, w3_ref, b3_ref,
                     out_ref):
    """One batch tile of the fused 3-layer MLP (3 matmuls + biases + 2 ReLUs).

    x_ref already contains concat([x, t]) truncated/zero-padded to the fc1
    contraction width, so fc1 is a single plain matmul.  x/W1 are bf16 (MXU
    single pass, f32 accumulation); everything downstream is f32.
    """
    # fc1 + ReLU
    h1 = jnp.dot(x_ref[...], w1_ref[...], preferred_element_type=jnp.float32)
    h1 = jnp.maximum(h1 + b1_ref[...], 0.0)

    # fc2 + ReLU (f32 weights, resident in VMEM)
    h2 = jnp.dot(h1, w2_ref[...], preferred_element_type=jnp.float32)
    h2 = jnp.maximum(h2 + b2_ref[...], 0.0)

    # fc3 (no activation); unpadded lane-masked store (few bytes >> unmasked vst).
    y = jnp.dot(h2, w3_ref[...], preferred_element_type=jnp.float32)
    out_ref[...] = (y + b3_ref[...]).astype(out_ref.dtype)


def guidance_forward(x, t, params, input_dim, *, tm=512, out_dtype=jnp.float32):
    """JAX wrapper mirroring Guidance.forward.

    x: any shape with leading batch dim; t: (B,) or (B, 1).
    params: dict with w1t (input_dim, H1), b1 (1, H1), w2t (H1, H2), b2 (1, H2),
            w3t (H2, out), b3 (1, out).  wNt are the transposed nn.Linear
            weights (PyTorch stores (out, in)).
    tm: preferred batch tile size (kept a multiple of 16; capped so the grid
        has >= 2 steps whenever the batch allows, for v7x dual-TC sharding).
    out_dtype: output dtype; float32 matches the torch module, bfloat16 halves
        output HBM traffic if the caller tolerates it.
    """
    B = x.shape[0]
    xf = x.reshape(B, -1)
    t2 = t.reshape(B, 1)
    F = xf.shape[1]
    F_cat = F + 1

    # Fold cat([x, t]) + zero-pad / truncate-to-input_dim into the fc1
    # contraction:
    #   * pad branch  (F_cat <  input_dim): the zero columns multiply W1 rows
    #     that contribute nothing, so only rows [:F_cat] of W1 are needed.
    #   * trunc branch (F_cat >  input_dim): columns beyond input_dim are
    #     dropped.  NOTE: this can silently drop t (and trailing x features) —
    #     that exactly matches the torch cat-then-truncate semantics.
    F_used = min(F_cat, input_dim)
    if F_used <= F:
        xcat = xf[:, :F_used]                       # truncation branch
    else:
        xcat = jnp.concatenate([xf, t2], axis=1)    # F_used == F + 1

    # Pad the contraction dim to a multiple of 16 for dense bf16 sublane
    # packing of the resident W1 tile; padded x columns are zero and multiply
    # zero W1 rows -> mathematically inert.
    F_pad = _round_up(F_used, 16)

    # Weights: W1 bf16 (matches the bf16 activation stream), the rest f32
    # (VMEM-resident, so full precision is free).
    w1 = params["w1t"][:F_used, :].astype(jnp.bfloat16)
    if F_pad != F_used:
        w1 = jnp.pad(w1, ((0, F_pad - F_used), (0, 0)))
    b1 = params["b1"].astype(jnp.float32)
    w2 = params["w2t"].astype(jnp.float32)
    b2 = params["b2"].astype(jnp.float32)
    w3 = params["w3t"].astype(jnp.float32)
    b3 = params["b3"].astype(jnp.float32)
    H1, H2, out_dim = w1.shape[1], w2.shape[1], w3.shape[1]

    # Batch tiling: big 16-aligned tiles amortize the ~0.35us per-step
    # overhead; whenever the (16-rounded) batch is >= 32 we force >= 2 grid
    # steps so the "parallel" batch axis can be sharded across both v7x
    # TensorCores.  tm is chosen so b_pad == B whenever B is already aligned
    # (avoids wrapper-side pad + output row slice).
    tm_cap = max(16, (tm // 16) * 16)
    b16 = _round_up(B, 16)
    if b16 < 32:
        n_steps = 1
        tm = b16
    else:
        n_steps = max(2, pl.cdiv(b16, tm_cap))
        tm = _round_up(pl.cdiv(b16, n_steps), 16)
        n_steps = pl.cdiv(b16, tm)
    b_pad = tm * n_steps
    grid = (n_steps,)

    # Single cast + single pad of the streamed activations (bf16 halves the
    # B-scaled HBM read).
    xcat = jnp.pad(xcat.astype(jnp.bfloat16),
                   ((0, b_pad - B), (0, F_pad - F_used)))

    # Truthful (bf16-in / unpadded-out) cost estimate for XLA's scheduler.
    out_itemsize = jnp.dtype(out_dtype).itemsize
    flops = 2 * b_pad * (F_pad * H1 + H1 * H2 + H2 * out_dim)
    bytes_accessed = (
        b_pad * F_pad * 2                                   # bf16 activations
        + w1.size * 2                                       # bf16 W1
        + (w2.size + w3.size + b1.size + b2.size + b3.size) * 4
        + b_pad * out_dim * out_itemsize                    # unpadded output
    )
    cost = pl.CostEstimate(flops=int(flops), transcendentals=0,
                           bytes_accessed=int(bytes_accessed))

    # VMEM budget derived from actual buffer sizes (v7x: 64 MiB physical/TC).
    buf_bytes = (
        2 * tm * F_pad * 2                                  # x tile, double-buffered
        + 2 * tm * out_dim * out_itemsize                   # out tile, double-buffered
        + 2 * (w1.size * 2
               + (w2.size + w3.size + b1.size + b2.size + b3.size) * 4)
        + tm * (H1 + H2) * 4                                # f32 intermediates
    )
    vmem_limit = int(min(64 << 20, max(16 << 20, 2 * buf_bytes)))

    tile = lambda shape: pl.BlockSpec(shape, lambda i: (i, 0))       # batch-tiled
    resident = lambda shape: pl.BlockSpec(shape, lambda i: (0, 0))   # stays in VMEM

    out = pl.pallas_call(
        _guidance_kernel,
        out_shape=jax.ShapeDtypeStruct((b_pad, out_dim), out_dtype),
        grid=grid,
        in_specs=[
            tile((tm, F_pad)),          # activations (bf16)
            resident((F_pad, H1)),      # W1 (bf16)
            resident((1, H1)),          # b1
            resident((H1, H2)),         # W2
            resident((1, H2)),          # b2
            resident((H2, out_dim)),    # W3 (unpadded)
            resident((1, out_dim)),     # b3
        ],
        out_specs=tile((tm, out_dim)),
        compiler_params=pltpu.CompilerParams(
            dimension_semantics=("parallel",),
            vmem_limit_bytes=vmem_limit,
        ),
        cost_estimate=cost,
    )(xcat, w1, b1, w2, b2, w3, b3)

    return out if b_pad == B else out[:B]


def init_params(key, input_dim, hidden_dim1, hidden_dim2, output_dim):
    """Deterministic synthetic parameters (uniform, PyTorch-Linear-like scale)."""
    ks = jax.random.split(key, 6)

    def lin(kw, kb, fan_in, fan_out):
        bound = 1.0 / jnp.sqrt(fan_in)
        # PyTorch weight is (out, in); store the transpose (in, out) for the kernel.
        w = jax.random.uniform(kw, (fan_in, fan_out), jnp.float32, -bound, bound)
        b = jax.random.uniform(kb, (1, fan_out), jnp.float32, -bound, bound)
        return w, b

    w1t, b1 = lin(ks[0], ks[1], input_dim, hidden_dim1)
    w2t, b2 = lin(ks[2], ks[3], hidden_dim1, hidden_dim2)
    w3t, b3 = lin(ks[4], ks[5], hidden_dim2, output_dim)
    return {"w1t": w1t, "b1": b1, "w2t": w2t, "b2": b2, "w3t": w3t, "b3": b3}


if __name__ == "__main__":
    key = jax.random.PRNGKey(0)
    kx, kt, kp, kx2, kt2 = jax.random.split(key, 5)

    # Module config
    input_dim, hidden_dim1, hidden_dim2, output_dim = 32, 64, 32, 16
    params = init_params(kp, input_dim, hidden_dim1, hidden_dim2, output_dim)

    def reference(xv, tv):
        # Pure-JAX f32 reference of the original torch module semantics.
        Bv = xv.shape[0]
        xr = jnp.concatenate([xv.reshape(Bv, -1), tv.reshape(Bv, 1)], axis=1)
        if xr.shape[1] < input_dim:
            xr = jnp.pad(xr, ((0, 0), (0, input_dim - xr.shape[1])))
        else:
            xr = xr[:, :input_dim]
        h = jnp.maximum(xr @ params["w1t"] + params["b1"], 0.0)
        h = jnp.maximum(h @ params["w2t"] + params["b2"], 0.0)
        return h @ params["w3t"] + params["b3"]

    # Case 1: B=64 -> 2-step batch grid (feeds both v7x TensorCores), no batch
    # padding, and the zero-pad feature branch (27 x-features + t = 28 < 32).
    B = 64
    x = jax.random.normal(kx, (B, 3, 3, 3), dtype=jnp.float32)
    t = jax.random.normal(kt, (B,), dtype=jnp.float32)
    out = jax.block_until_ready(guidance_forward(x, t, params, input_dim))
    ref = reference(x, t)
    assert out.shape == (B, output_dim)
    assert bool(jnp.all(jnp.isfinite(out)))
    # Tolerance accounts for bf16 activation/W1 quantization (f32 accumulate).
    assert jnp.allclose(out, ref, atol=5e-2, rtol=5e-2)

    # Case 2: small odd batch (B=10) -> single-step grid with row padding + slice.
    B2 = 10
    x2 = jax.random.normal(kx2, (B2, 3, 3, 3), dtype=jnp.float32)
    t2 = jax.random.normal(kt2, (B2,), dtype=jnp.float32)
    out2 = jax.block_until_ready(guidance_forward(x2, t2, params, input_dim))
    ref2 = reference(x2, t2)
    assert out2.shape == (B2, output_dim)
    assert jnp.allclose(out2, ref2, atol=5e-2, rtol=5e-2)

    # TODO(synk): the cat-then-truncate branch (features + 1 > input_dim,
    # which silently drops t exactly like the torch code) is implemented but
    # not exercised by this toy config.

    print("KERNEL_OK")
</pallas_src>

<mosaic_0001>
module attributes {stable_mosaic.version = 11 : i64} {
  func.func @_guidance_kernel(%arg0: i32, %arg1: memref<32x32xbf16, #tpu.memory_space<vmem>>, %arg2: memref<32x64xbf16, #tpu.memory_space<vmem>>, %arg3: memref<1x64xf32, #tpu.memory_space<vmem>>, %arg4: memref<64x32xf32, #tpu.memory_space<vmem>>, %arg5: memref<1x32xf32, #tpu.memory_space<vmem>>, %arg6: memref<32x16xf32, #tpu.memory_space<vmem>>, %arg7: memref<1x16xf32, #tpu.memory_space<vmem>>, %arg8: memref<32x16xf32, #tpu.memory_space<vmem>>) attributes {dimension_semantics = [#tpu.dimension_semantics<parallel>], iteration_bounds = array<i64: 2>, scalar_prefetch = 0 : i64, scratch_operands = 0 : i64, tpu.core_type = #tpu.core_type<tc>, window_params = [{transform_indices = @transform_0, window_bounds = array<i64: 32, 32>}, {pipeline_mode = #tpu.pipeline_mode<synchronous>, transform_indices = @transform_1, window_bounds = array<i64: 32, 64>}, {pipeline_mode = #tpu.pipeline_mode<synchronous>, transform_indices = @transform_2, window_bounds = array<i64: 1, 64>}, {pipeline_mode = #tpu.pipeline_mode<synchronous>, transform_indices = @transform_3, window_bounds = array<i64: 64, 32>}, {pipeline_mode = #tpu.pipeline_mode<synchronous>, transform_indices = @transform_4, window_bounds = array<i64: 1, 32>}, {pipeline_mode = #tpu.pipeline_mode<synchronous>, transform_indices = @transform_5, window_bounds = array<i64: 32, 16>}, {pipeline_mode = #tpu.pipeline_mode<synchronous>, transform_indices = @transform_6, window_bounds = array<i64: 1, 16>}, {transform_indices = @transform_7, window_bounds = array<i64: 32, 16>}]} {
    %c0 = arith.constant 0 : index
    %c0_0 = arith.constant 0 : index
    %0 = vector.load %arg1[%c0, %c0_0] : memref<32x32xbf16, #tpu.memory_space<vmem>>, vector<32x32xbf16>
    %c0_1 = arith.constant 0 : index
    %c0_2 = arith.constant 0 : index
    %1 = vector.load %arg2[%c0_1, %c0_2] : memref<32x64xbf16, #tpu.memory_space<vmem>>, vector<32x64xbf16>
    %cst = arith.constant dense<0.000000e+00> : vector<32x64xf32>
    %2 = tpu.matmul %0, %1, %cst {dimension_numbers = #tpu.dot_dimension_numbers<[1], [0], [0], [1], [0, 0, 1, 1], [], []>} : vector<32x32xbf16>, vector<32x64xbf16>, vector<32x64xf32> -> vector<32x64xf32>
    %c0_3 = arith.constant 0 : index
    %c0_4 = arith.constant 0 : index
    %3 = vector.load %arg3[%c0_3, %c0_4] : memref<1x64xf32, #tpu.memory_space<vmem>>, vector<1x64xf32>
    %4 = vector.broadcast %3 : vector<1x64xf32> to vector<32x64xf32>
    %5 = arith.addf %2, %4 : vector<32x64xf32>
    %cst_5 = arith.constant 0.000000e+00 : f32
    %6 = vector.broadcast %cst_5 : f32 to vector<32x64xf32>
    %7 = arith.maximumf %5, %6 : vector<32x64xf32>
    %c0_6 = arith.constant 0 : index
    %c0_7 = arith.constant 0 : index
    %8 = vector.load %arg4[%c0_6, %c0_7] : memref<64x32xf32, #tpu.memory_space<vmem>>, vector<64x32xf32>
    %cst_8 = arith.constant dense<0.000000e+00> : vector<32x32xf32>
    %9 = tpu.matmul %7, %8, %cst_8 {dimension_numbers = #tpu.dot_dimension_numbers<[1], [0], [0], [1], [0, 0, 1, 1], [], []>} : vector<32x64xf32>, vector<64x32xf32>, vector<32x32xf32> -> vector<32x32xf32>
    %c0_9 = arith.constant 0 : index
    %c0_10 = arith.constant 0 : index
    %10 = vector.load %arg5[%c0_9, %c0_10] : memref<1x32xf32, #tpu.memory_space<vmem>>, vector<1x32xf32>
    %11 = vector.broadcast %10 : vector<1x32xf32> to vector<32x32xf32>
    %12 = arith.addf %9, %11 : vector<32x32xf32>
    %cst_11 = arith.constant 0.000000e+00 : f32
    %13 = vector.broadcast %cst_11 : f32 to vector<32x32xf32>
    %14 = arith.maximumf %12, %13 : vector<32x32xf32>
    %c0_12 = arith.constant 0 : index
    %c0_13 = arith.constant 0 : index
    %15 = vector.load %arg6[%c0_12, %c0_13] : memref<32x16xf32, #tpu.memory_space<vmem>>, vector<32x16xf32>
    %cst_14 = arith.constant dense<0.000000e+00> : vector<32x16xf32>
    %16 = tpu.matmul %14, %15, %cst_14 {dimension_numbers = #tpu.dot_dimension_numbers<[1], [0], [0], [1], [0, 0, 1, 1], [], []>} : vector<32x32xf32>, vector<32x16xf32>, vector<32x16xf32> -> vector<32x16xf32>
    %c0_15 = arith.constant 0 : index
    %c0_16 = arith.constant 0 : index
    %17 = vector.load %arg7[%c0_15, %c0_16] : memref<1x16xf32, #tpu.memory_space<vmem>>, vector<1x16xf32>
    %18 = vector.broadcast %17 : vector<1x16xf32> to vector<32x16xf32>
    %19 = arith.addf %16, %18 : vector<32x16xf32>
    %c0_17 = arith.constant 0 : index
    %c0_18 = arith.constant 0 : index
    %20 = vector.load %arg8[%c0_17, %c0_18] : memref<32x16xf32, #tpu.memory_space<vmem>>, vector<32x16xf32>
    tpu.vector_store %arg8[%c0_17, %c0_18], %19 {strides = array<i32>} : memref<32x16xf32, #tpu.memory_space<vmem>>, vector<32x16xf32>,
    return
  }
  func.func @transform_0(%arg0: i32) -> (i32, i32) {
    %c0_i32 = arith.constant 0 : i32
    %c0_i32_0 = arith.constant 0 : i32
    return %arg0, %c0_i32 : i32, i32
  }
  func.func @transform_1(%arg0: i32) -> (i32, i32) {
    %c0_i32 = arith.constant 0 : i32
    %c0_i32_0 = arith.constant 0 : i32
    %c0_i32_1 = arith.constant 0 : i32
    return %c0_i32, %c0_i32_0 : i32, i32
  }
  func.func @transform_2(%arg0: i32) -> (i32, i32) {
    %c0_i32 = arith.constant 0 : i32
    %c0_i32_0 = arith.constant 0 : i32
    %c0_i32_1 = arith.constant 0 : i32
    return %c0_i32, %c0_i32_0 : i32, i32
  }
  func.func @transform_3(%arg0: i32) -> (i32, i32) {
    %c0_i32 = arith.constant 0 : i32
    %c0_i32_0 = arith.constant 0 : i32
    %c0_i32_1 = arith.constant 0 : i32
    return %c0_i32, %c0_i32_0 : i32, i32
  }
  func.func @transform_4(%arg0: i32) -> (i32, i32) {
    %c0_i32 = arith.constant 0 : i32
    %c0_i32_0 = arith.constant 0 : i32
    %c0_i32_1 = arith.constant 0 : i32
    return %c0_i32, %c0_i32_0 : i32, i32
  }
  func.func @transform_5(%arg0: i32) -> (i32, i32) {
    %c0_i32 = arith.constant 0 : i32
    %c0_i32_0 = arith.constant 0 : i32
    %c0_i32_1 = arith.constant 0 : i32
    return %c0_i32, %c0_i32_0 : i32, i32
  }
  func.func @transform_6(%arg0: i32) -> (i32, i32) {
    %c0_i32 = arith.constant 0 : i32
    %c0_i32_0 = arith.constant 0 : i32
    %c0_i32_1 = arith.constant 0 : i32
    return %c0_i32, %c0_i32_0 : i32, i32
  }
  func.func @transform_7(%arg0: i32) -> (i32, i32) {
    %c0_i32 = arith.constant 0 : i32
    %c0_i32_0 = arith.constant 0 : i32
    return %arg0, %c0_i32 : i32, i32
  }
}

</mosaic_0001>

<llo_original>
// kernel: tpu_custom_call.1
$region0: #{tpu_custom_call.1}
  #allocation0 [shape = 'u32[]', space=smem, size = 0x4, offset = 0x4, fixed_abs, tag = 'smem constant byte address 0x4 - core index']
  #allocation1 [shape = 'u32[72,128]{1,0:T(1,128)}', space=vmem, size = 0x9000, scoped, tag = 'internal scratch']
  %s0 = inlined_call_operand.vmem [shape: bf16[64,32], index: 0, kind: input, shape index: {}]
  %s1 = inlined_call_operand.vmem [shape: bf16[32,64], index: 1, kind: input, shape index: {}]
  %s2 = inlined_call_operand.vmem [shape: f32[1,64], index: 2, kind: input, shape index: {}]
  %s3 = inlined_call_operand.vmem [shape: f32[64,32], index: 3, kind: input, shape index: {}]
  %s4 = inlined_call_operand.vmem [shape: f32[1,32], index: 4, kind: input, shape index: {}]
  %s5 = inlined_call_operand.vmem [shape: f32[32,16], index: 5, kind: input, shape index: {}]
  %s6 = inlined_call_operand.vmem [shape: f32[1,16], index: 6, kind: input, shape index: {}]
  %s7 = inlined_call_operand.vmem [shape: f32[64,16], index: 7, kind: output, shape index: {}]
  %s8 = sld [smem:[#allocation0]]
  $region61: #{tpu_custom_call.1} parent=0
    _
  %s10 = ssub.s32 1, %s8
  %s11 = scalar_select 0, %s10, %s8
  loop: start=0, step=1, limit=4
  $region2: #{tpu_custom_call.1} parent=0 // loop_pre_header
    _
  $region3: #{tpu_custom_call.1} parent=0 // loop_header
    %s13 = sphi 0, %s17
    %p14 = scmp.ge.s32.totalorder %s13, 4
    %s23 = sphi 0, %s25
    %s26 = sphi 0, %s23
    %s27 = sphi 0, %s26
    %s43 = sphi 0, %s27
    %s47 = sphi 0, %s47
    %s49 = sphi 0, %s47
    %s50 = sphi 0, %s49
    %s64 = sphi 0, %s50
    %s68 = sphi 0, %s68
    %s70 = sphi 0, %s68
    %s71 = sphi 0, %s70
    %s85 = sphi 0, %s71
    %s89 = sphi 0, %s89
    %s91 = sphi 0, %s89
    %s92 = sphi 0, %s91
    %s106 = sphi 0, %s92
    %s110 = sphi 0, %s110
    %s112 = sphi 0, %s110
    %s113 = sphi 0, %s112
    %s127 = sphi 0, %s113
    %s131 = sphi 0, %s131
    %s133 = sphi 0, %s131
    %s134 = sphi 0, %s133
    %s148 = sphi 0, %s134
    %s152 = sphi 0, %s152
    %s154 = sphi 0, %s152
    %s155 = sphi 0, %s154
    %s169 = sphi 0, %s155
    %s175 = sphi 0, %s177
    %s178 = sphi 0, %s175
    %s179 = sphi 0, %s178
    %s195 = sphi 0, %s179
  $region4: #{tpu_custom_call.1} parent=0 // loop_header_branch
    %16 = sbr.rel (%p14) target = $region8
  $region5: #{tpu_custom_call.1} parent=0 // loop_body
    %s18 = ssub.s32 %s13, 1
    %s19 = ssub.s32 %s13, 2
    %s20 = sadd.s32 %s13, 1
    %s21 = ssub.s32 %s13, %s20
    %p22 = scmp.eq.s32.totalorder %s21, 0
    %s24 = sadd.s32 %s23, 1
    %s25 = scalar_select %p22, %s23, %s24
    %p28 = pneg %p22
    %p29 = scmp.eq.s32.totalorder %s13, 1
    %p30 = por %p28, %p29
    %p31 = scmp.ne.s32.totalorder %s23, %s26
    %p32 = scmp.eq.s32.totalorder %s13, 0
    %p33 = por %p31, %p32
    %p34 = scmp.ne.s32.totalorder %s23, %s26
    %p35 = scmp.eq.s32.totalorder %s18, 1
    %p36 = por %p34, %p35
    %p37 = scmp.ne.s32.totalorder %s26, %s27
    %p38 = scmp.eq.s32.totalorder %s18, 0
    %p39 = por %p37, %p38
    %p40 = scmp.ne.s32.totalorder %s26, %s27
    %p41 = scmp.eq.s32.totalorder %s19, 1
    %p42 = por %p40, %p41
    %p44 = scmp.ne.s32.totalorder %s27, %s43
    %p45 = scmp.eq.s32.totalorder %s19, 0
    %p46 = por %p44, %p45
    %s48 = sadd.s32 %s47, 1
    %p51 = scmp.eq.s32.totalorder %s13, 1
    %p52 = scmp.ne.s32.totalorder %s47, %s49
    %p53 = scmp.eq.s32.totalorder %s13, 0
    %p54 = por %p52, %p53
    %p55 = scmp.ne.s32.totalorder %s47, %s49
    %p56 = scmp.eq.s32.totalorder %s18, 1
    %p57 = por %p55, %p56
    %p58 = scmp.ne.s32.totalorder %s49, %s50
    %p59 = scmp.eq.s32.totalorder %s18, 0
    %p60 = por %p58, %p59
    %p61 = scmp.ne.s32.totalorder %s49, %s50
    %p62 = scmp.eq.s32.totalorder %s19, 1
    %p63 = por %p61, %p62
    %p65 = scmp.ne.s32.totalorder %s50, %s64
    %p66 = scmp.eq.s32.totalorder %s19, 0
    %p67 = por %p65, %p66
    %s69 = sadd.s32 %s68, 1
    %p72 = scmp.eq.s32.totalorder %s13, 1
    %p73 = scmp.ne.s32.totalorder %s68, %s70
    %p74 = scmp.eq.s32.totalorder %s13, 0
    %p75 = por %p73, %p74
    %p76 = scmp.ne.s32.totalorder %s68, %s70
    %p77 = scmp.eq.s32.totalorder %s18, 1
    %p78 = por %p76, %p77
    %p79 = scmp.ne.s32.totalorder %s70, %s71
    %p80 = scmp.eq.s32.totalorder %s18, 0
    %p81 = por %p79, %p80
    %p82 = scmp.ne.s32.totalorder %s70, %s71
    %p83 = scmp.eq.s32.totalorder %s19, 1
    %p84 = por %p82, %p83
    %p86 = scmp.ne.s32.totalorder %s71, %s85
    %p87 = scmp.eq.s32.totalorder %s19, 0
    %p88 = por %p86, %p87
    %s90 = sadd.s32 %s89, 1
    %p93 = scmp.eq.s32.totalorder %s13, 1
    %p94 = scmp.ne.s32.totalorder %s89, %s91
    %p95 = scmp.eq.s32.totalorder %s13, 0
    %p96 = por %p94, %p95
    %p97 = scmp.ne.s32.totalorder %s89, %s91
    %p98 = scmp.eq.s32.totalorder %s18, 1
    %p99 = por %p97, %p98
    %p100 = scmp.ne.s32.totalorder %s91, %s92
    %p101 = scmp.eq.s32.totalorder %s18, 0
    %p102 = por %p100, %p101
    %p103 = scmp.ne.s32.totalorder %s91, %s92
    %p104 = scmp.eq.s32.totalorder %s19, 1
    %p105 = por %p103, %p104
    %p107 = scmp.ne.s32.totalorder %s92, %s106
    %p108 = scmp.eq.s32.totalorder %s19, 0
    %p109 = por %p107, %p108
    %s111 = sadd.s32 %s110, 1
    %p114 = scmp.eq.s32.totalorder %s13, 1
    %p115 = scmp.ne.s32.totalorder %s110, %s112
    %p116 = scmp.eq.s32.totalorder %s13, 0
    %p117 = por %p115, %p116
    %p118 = scmp.ne.s32.totalorder %s110, %s112
    %p119 = scmp.eq.s32.totalorder %s18, 1
    %p120 = por %p118, %p119
    %p121 = scmp.ne.s32.totalorder %s112, %s113
    %p122 = scmp.eq.s32.totalorder %s18, 0
    %p123 = por %p121, %p122
    %p124 = scmp.ne.s32.totalorder %s112, %s113
    %p125 = scmp.eq.s32.totalorder %s19, 1
    %p126 = por %p124, %p125
    %p128 = scmp.ne.s32.totalorder %s113, %s127
    %p129 = scmp.eq.s32.totalorder %s19, 0
    %p130 = por %p128, %p129
    %s132 = sadd.s32 %s131, 1
    %p135 = scmp.eq.s32.totalorder %s13, 1
    %p136 = scmp.ne.s32.totalorder %s131, %s133
    %p137 = scmp.eq.s32.totalorder %s13, 0
    %p138 = por %p136, %p137
    %p139 = scmp.ne.s32.totalorder %s131, %s133
    %p140 = scmp.eq.s32.totalorder %s18, 1
    %p141 = por %p139, %p140
    %p142 = scmp.ne.s32.totalorder %s133, %s134
    %p143 = scmp.eq.s32.totalorder %s18, 0
    %p144 = por %p142, %p143
    %p145 = scmp.ne.s32.totalorder %s133, %s134
    %p146 = scmp.eq.s32.totalorder %s19, 1
    %p147 = por %p145, %p146
    %p149 = scmp.ne.s32.totalorder %s134, %s148
    %p150 = scmp.eq.s32.totalorder %s19, 0
    %p151 = por %p149, %p150
    %s153 = sadd.s32 %s152, 1
    %p156 = scmp.eq.s32.totalorder %s13, 1
    %p157 = scmp.ne.s32.totalorder %s152, %s154
    %p158 = scmp.eq.s32.totalorder %s13, 0
    %p159 = por %p157, %p158
    %p160 = scmp.ne.s32.totalorder %s152, %s154
    %p161 = scmp.eq.s32.totalorder %s18, 1
    %p162 = por %p160, %p161
    %p163 = scmp.ne.s32.totalorder %s154, %s155
    %p164 = scmp.eq.s32.totalorder %s18, 0
    %p165 = por %p163, %p164
    %p166 = scmp.ne.s32.totalorder %s154, %s155
    %p167 = scmp.eq.s32.totalorder %s19, 1
    %p168 = por %p166, %p167
    %p170 = scmp.ne.s32.totalorder %s155, %s169
    %p171 = scmp.eq.s32.totalorder %s19, 0
    %p172 = por %p170, %p171
    %s173 = ssub.s32 %s13, %s20
    %p174 = scmp.eq.s32.totalorder %s173, 0
    %s176 = sadd.s32 %s175, 1
    %s177 = scalar_select %p174, %s175, %s176
    %p180 = pneg %p174
    %p181 = scmp.eq.s32.totalorder %s13, 1
    %p182 = por %p180, %p181
    %p183 = scmp.ne.s32.totalorder %s175, %s178
    %p184 = scmp.eq.s32.totalorder %s13, 0
    %p185 = por %p183, %p184
    %p186 = scmp.ne.s32.totalorder %s175, %s178
    %p187 = scmp.eq.s32.totalorder %s18, 1
    %p188 = por %p186, %p187
    %p189 = scmp.ne.s32.totalorder %s178, %s179
    %p190 = scmp.eq.s32.totalorder %s18, 0
    %p191 = por %p189, %p190
    %p192 = scmp.ne.s32.totalorder %s178, %s179
    %p193 = scmp.eq.s32.totalorder %s19, 1
    %p194 = por %p192, %p193
    %p196 = scmp.ne.s32.totalorder %s179, %s195
    %p197 = scmp.eq.s32.totalorder %s19, 0
    %p198 = por %p196, %p197
    %p199 = scmp.le.s32.totalorder 1, %s13
    %p200 = scmp.lt.s32.totalorder %s13, 3
    %p201 = pnand %p199, %p200
    %p202 = pneg %p201
    // Predicated region
    $region9: #{tpu_custom_call.1} parent=5 // pred_check
      _
    $region10: #{tpu_custom_call.1} parent=5 // pred_check_branch
      %204 = sbr.rel (%p201) target = $region12
    $region11: #{tpu_custom_call.1} parent=5 // pred_region
      %s205 = ssub.s32 %s13, 1
      // Predicated region
      $region13: #{tpu_custom_call.1} parent=11 // pred_check
        %p206 = pneg %p60
      $region14: #{tpu_custom_call.1} parent=11 // pred_check_branch
        %208 = sbr.rel (%p206) target = $region16
      $region15: #{tpu_custom_call.1} parent=11 // pred_region
        _
      $region16: #{tpu_custom_call.1} parent=11 // pred_fallthru
        _
      // Predicated region
      $region17: #{tpu_custom_call.1} parent=11 // pred_check
        %p209 = pneg %p81
      $region18: #{tpu_custom_call.1} parent=11 // pred_check_branch
        %211 = sbr.rel (%p209) target = $region20
      $region19: #{tpu_custom_call.1} parent=11 // pred_region
        _
      $region20: #{tpu_custom_call.1} parent=11 // pred_fallthru
        _
      // Predicated region
      $region21: #{tpu_custom_call.1} parent=11 // pred_check
        %p212 = pneg %p102
      $region22: #{tpu_custom_call.1} parent=11 // pred_check_branch
        %214 = sbr.rel (%p212) target = $region24
      $region23: #{tpu_custom_call.1} parent=11 // pred_region
        _
      $region24: #{tpu_custom_call.1} parent=11 // pred_fallthru
        _
      // Predicated region
      $region25: #{tpu_custom_call.1} parent=11 // pred_check
        %p215 = pneg %p123
      $region26: #{tpu_custom_call.1} parent=11 // pred_check_branch
        %217 = sbr.rel (%p215) target = $region28
      $region27: #{tpu_custom_call.1} parent=11 // pred_region
        _
      $region28: #{tpu_custom_call.1} parent=11 // pred_fallthru
        _
      // Predicated region
      $region29: #{tpu_custom_call.1} parent=11 // pred_check
        %p218 = pneg %p144
      $region30: #{tpu_custom_call.1} parent=11 // pred_check_branch
        %220 = sbr.rel (%p218) target = $region32
      $region31: #{tpu_custom_call.1} parent=11 // pred_region
        _
      $region32: #{tpu_custom_call.1} parent=11 // pred_fallthru
        _
      // Predicated region
      $region33: #{tpu_custom_call.1} parent=11 // pred_check
        %p221 = pneg %p165
      $region34: #{tpu_custom_call.1} parent=11 // pred_check_branch
        %223 = sbr.rel (%p221) target = $region36
      $region35: #{tpu_custom_call.1} parent=11 // pred_region
        _
      $region36: #{tpu_custom_call.1} parent=11 // pred_fallthru
        _
    $region12: #{tpu_custom_call.1} parent=5 // pred_fallthru
      _
    %p224 = scmp.lt.s32.totalorder %s13, 2
    // Predicated region
    $region37: #{tpu_custom_call.1} parent=5 // pred_check
      %p225 = pneg %p224
    $region38: #{tpu_custom_call.1} parent=5 // pred_check_branch
      %227 = sbr.rel (%p225) target = $region40
    $region39: #{tpu_custom_call.1} parent=5 // pred_region
      // Predicated region
      $region41: #{tpu_custom_call.1} parent=39 // pred_check
        %p228 = pneg %p33
      $region42: #{tpu_custom_call.1} parent=39 // pred_check_branch
        %230 = sbr.rel (%p228) target = $region44
      $region43: #{tpu_custom_call.1} parent=39 // pred_region
        %s231 = smul.u32 4, %s13
        %p232 = scmp.lt.s32.totalorder %s231, 7
        %s233 = scalar_select %p232, %s231, 7
        %s234 = smul.addr %s233, 4
        %s235 = scalar_lea.vmem %s0, %s234
        %s236 = smul.u32 4, %s13
      $region44: #{tpu_custom_call.1} parent=39 // pred_fallthru
        _
    $region40: #{tpu_custom_call.1} parent=5 // pred_fallthru
      _
    %p237 = scmp.le.s32.totalorder 1, %s13
    %p238 = scmp.lt.s32.totalorder %s13, 3
    %p239 = pnand %p237, %p238
    %p240 = pneg %p239
    // Predicated region
    $region45: #{tpu_custom_call.1} parent=5 // pred_check
      _
    $region46: #{tpu_custom_call.1} parent=5 // pred_check_branch
      %242 = sbr.rel (%p239) target = $region48
    $region47: #{tpu_custom_call.1} parent=5 // pred_region
      %s243 = ssub.s32 %s13, 1
      %s244 = smul.u32 4, %s18
      %p245 = scmp.lt.s32.totalorder %s244, 7
      %s246 = scalar_select %p245, %s244, 7
      %s247 = smul.addr %s246, 4
      %s248 = scalar_lea.vmem %s0, %s247
      %p249 = pneg %p39
      %p250 = pneg %p36
      %p251 = pneg %p60
      %p252 = pneg %p57
      %p253 = pneg %p81
      %p254 = pneg %p78
      %p255 = pneg %p102
      %p256 = pneg %p99
      %p257 = pneg %p123
      %p258 = pneg %p120
      %p259 = pneg %p144
      %p260 = pneg %p141
      %p261 = pneg %p165
      %p262 = pneg %p162
      %p263 = pneg %p191
      %p264 = pneg %p188
      %s265 = smul.u32 4, %s18
      %p266 = scmp.lt.s32.totalorder %s265, 7
      %s267 = scalar_select %p266, %s265, 7
      %s268 = smul.addr %s267, 8
      %s269 = scalar_lea.vmem %s7, %s268
      %s270 = smul.u32 4, %s18
      %p271 = scmp.lt.s32.totalorder %s270, 7
      %s272 = scalar_select %p271, %s270, 7
      %s273 = smul.addr %s272, 4
      %s274 = scalar_lea.vmem %s0, %s273
      %s275 = smul.u32 4, %s18
      %s276 = smul.u32 4, %s18
      %p277 = scmp.lt.s32.totalorder %s276, 7
      %s278 = scalar_select %p277, %s276, 7
      %s279 = smul.addr %s278, 8
      %s280 = scalar_lea.vmem %s7, %s279
      %s281 = smul.u32 4, %s18
      %v283 = vld [vmem:[%s274] sm:$0xf]
      %v284 = vld [vmem:[%s274 + $0x4] sm:$0xf]
      %v285 = vld [vmem:[%s274 + $0x8] sm:$0xf]
      %v286 = vld [vmem:[%s274 + $0xc] sm:$0xf]
      %v287 = vld [vmem:[%s1] sm:$0xf]
      %v288 = vld [vmem:[%s1 + $0x4] sm:$0xf]
      %v289 = vld [vmem:[%s1 + $0x8] sm:$0xf]
      %v290 = vld [vmem:[%s1 + $0xc] sm:$0xf]
      %v291 = vld [vmem:[%s2] sm:$0x1]
      %v293 = vperm.slane %v291, 0
      %v299 = vunpack.c.l.b16 %v283
      %v300 = vunpack.c.l.b16 %v284
      %v301 = vunpack.c.l.b16 %v285
      %v302 = vunpack.c.l.b16 %v286
      %v303 = vpack.c.b16 %v300, %v299
      %v304 = vpack.c.b16 %v302, %v301
      %v309 = vunpack.c.l.b16 %v287
      %v310 = vunpack.c.l.b16 %v288
      %v311 = vunpack.c.l.b16 %v289
      %v312 = vunpack.c.l.b16 %v290
      %v313 = vpack.c.b16 %v310, %v309
      %v314 = vpack.c.b16 %v312, %v311
      %vm317 = vcmask 261120
      %v319 = vsel %vm317, %v303, 0
      %v322 = vsel %vm317, %v304, 0
      %324 = vmatpush.bf16.msra.mxu0 0
      %325 = vmatpush.bf16.msra.mxu0 0
      %326 = vmatpush.bf16.msra.mxu0 0
      %327 = vmatpush.bf16.msra.mxu0 0
      %328 = vmatpush.bf16.msra.mxu0 0
      %329 = vmatpush.bf16.msra.mxu0 0
      %330 = vmatpush.bf16.msra.mxu0 %v314
      %331 = vmatpush.bf16.msra.mxu0 %v313
      %332 = vmatmul.bf16.gmra.mxu0 %v319
      %v333 = vpop.f32.mrf.mxu0
      %v334 = vadd.f32 %v293, %v333
      %v335 = vpop.f32.mrf.mxu0
      %v336 = vadd.f32 %v293, %v335
      %337 = vmatmul.bf16.gmra.mxu0 %v322
      %v338 = vpop.f32.mrf.mxu0
      %v339 = vadd.f32 %v293, %v338
      %v340 = vpop.f32.mrf.mxu0
      %v341 = vadd.f32 %v293, %v340
      %342 = vdwg.mxu0
      %v343 = vmax.f32 %v334, 0.0
      %v344 = vmax.f32 %v336, 0.0
      %v345 = vmax.f32 %v339, 0.0
      %v346 = vmax.f32 %v341, 0.0
      %v347 = vld [vmem:[%s3] sm:$0xff]
      %v348 = vld [vmem:[%s3 + $0x8] sm:$0xff]
      %v349 = vld [vmem:[%s3 + $0x10] sm:$0xff]
      %v350 = vld [vmem:[%s3 + $0x18] sm:$0xff]
      %v351 = vld [vmem:[%s3 + $0x20] sm:$0xff]
      %v352 = vld [vmem:[%s3 + $0x28] sm:$0xff]
      %v353 = vld [vmem:[%s3 + $0x30] sm:$0xff]
      %v354 = vld [vmem:[%s3 + $0x38] sm:$0xff]
      %v355 = vld [vmem:[%s4] sm:$0x1]
      %v357 = vperm.slane %v355, 0
      %vm359 = vcmask 523264
      %v361 = vsel %vm359, %v343, 0
      %v364 = vsel %vm359, %v344, 0
      %v367 = vsel %vm359, %v345, 0
      %v370 = vsel %vm359, %v346, 0
      %372 = vmatpush.msra.mxu0 0.0
      %373 = vmatpush.msra.mxu0 0.0
      %374 = vmatpush.msra.mxu0 0.0
      %375 = vmatpush.msra.mxu0 0.0
      %376 = vmatpush.msra.mxu0 0.0
      %377 = vmatpush.msra.mxu0 0.0
      %378 = vmatpush.msra.mxu0 0.0
      %379 = vmatpush.msra.mxu0 0.0
      %380 = vmatpush.msra.mxu0 %v354
      %381 = vmatpush.msra.mxu0 %v353
      %382 = vmatpush.msra.mxu0 %v352
      %383 = vmatpush.msra.mxu0 %v351
      %384 = vmatpush.msra.mxu0 %v350
      %385 = vmatpush.msra.mxu0 %v349
      %386 = vmatpush.msra.mxu0 %v348
      %387 = vmatpush.msra.mxu0 %v347
      %388 = vmatmul.f32.gmra.mxu0 %v361
      %v389 = vpop.f32.mrf.mxu0
      %v390 = vadd.f32 %v357, %v389
      %391 = vmatmul.f32.gmra.mxu0 %v364
      %v392 = vpop.f32.mrf.mxu0
      %v393 = vadd.f32 %v357, %v392
      %394 = vmatmul.f32.gmra.mxu0 %v367
      %v395 = vpop.f32.mrf.mxu0
      %v396 = vadd.f32 %v357, %v395
      %397 = vmatmul.f32.gmra.mxu0 %v370
      %v398 = vpop.f32.mrf.mxu0
      %v399 = vadd.f32 %v357, %v398
      %400 = vdwg.mxu0
      %v401 = vmax.f32 %v390, 0.0
      %v402 = vmax.f32 %v393, 0.0
      %v403 = vmax.f32 %v396, 0.0
      %v404 = vmax.f32 %v399, 0.0
      %v405 = vld [vmem:[%s5] sm:$0xff]
      %v406 = vld [vmem:[%s5 + $0x8] sm:$0xff]
      %v407 = vld [vmem:[%s5 + $0x10] sm:$0xff]
      %v408 = vld [vmem:[%s5 + $0x18] sm:$0xff]
      %v409 = vld [vmem:[%s6] sm:$0x1]
      %v411 = vperm.slane %v409, 0
      %v414 = vsel %vm317, %v401, 0
      %v417 = vsel %vm317, %v402, 0
      %v420 = vsel %vm317, %v403, 0
      %v423 = vsel %vm317, %v404, 0
      %425 = vmatpush.msra.mxu0 0.0
      %426 = vmatpush.msra.mxu0 0.0
      %427 = vmatpush.msra.mxu0 0.0
      %428 = vmatpush.msra.mxu0 0.0
      %429 = vmatpush.msra.mxu0 0.0
      %430 = vmatpush.msra.mxu0 0.0
      %431 = vmatpush.msra.mxu0 0.0
      %432 = vmatpush.msra.mxu0 0.0
      %433 = vmatpush.msra.mxu0 0.0
      %434 = vmatpush.msra.mxu0 0.0
      %435 = vmatpush.msra.mxu0 0.0
      %436 = vmatpush.msra.mxu0 0.0
      %437 = vmatpush.msra.mxu0 %v408
      %438 = vmatpush.msra.mxu0 %v407
      %439 = vmatpush.msra.mxu0 %v406
      %440 = vmatpush.msra.mxu0 %v405
      %441 = vmatmul.f32.gmra.mxu0 %v414
      %v442 = vpop.f32.mrf.mxu0
      %v443 = vadd.f32 %v411, %v442
      %444 = vmatmul.f32.gmra.mxu0 %v417
      %v445 = vpop.f32.mrf.mxu0
      %v446 = vadd.f32 %v411, %v445
      %447 = vmatmul.f32.gmra.mxu0 %v420
      %v448 = vpop.f32.mrf.mxu0
      %v449 = vadd.f32 %v411, %v448
      %450 = vmatmul.f32.gmra.mxu0 %v423
      %v451 = vpop.f32.mrf.mxu0
      %v452 = vadd.f32 %v411, %v451
      %453 = vdwg.mxu0
      %vm454 = vcmask 130048
      %455 = vst.msk [vmem:[%s280] sm:$0xff] %vm454, %v443
      %456 = vst.msk [vmem:[%s280 + $0x8] sm:$0xff] %vm454, %v446
      %457 = vst.msk [vmem:[%s280 + $0x10] sm:$0xff] %vm454, %v449
      %458 = vst.msk [vmem:[%s280 + $0x18] sm:$0xff] %vm454, %v452
      %s459 = smul.u32 4, %s18
      %p460 = scmp.lt.s32.totalorder %s459, 7
      %s461 = scalar_select %p460, %s459, 7
      %s462 = smul.addr %s461, 8
      %s463 = scalar_lea.vmem %s7, %s462
      // Predicated region
      $region49: #{tpu_custom_call.1} parent=47 // pred_check
        %p464 = pneg %p188
      $region50: #{tpu_custom_call.1} parent=47 // pred_check_branch
        %466 = sbr.rel (%p464) target = $region52
      $region51: #{tpu_custom_call.1} parent=47 // pred_region
        %s467 = smul.u32 4, %s18
      $region52: #{tpu_custom_call.1} parent=47 // pred_fallthru
        _
    $region48: #{tpu_custom_call.1} parent=5 // pred_fallthru
      _
    %p468 = scmp.le.s32.totalorder 2, %s13
    // Predicated region
    $region53: #{tpu_custom_call.1} parent=5 // pred_check
      %p469 = pneg %p468
    $region54: #{tpu_custom_call.1} parent=5 // pred_check_branch
      %471 = sbr.rel (%p469) target = $region56
    $region55: #{tpu_custom_call.1} parent=5 // pred_region
      %s472 = ssub.s32 %s13, 2
      // Predicated region
      $region57: #{tpu_custom_call.1} parent=55 // pred_check
        %p473 = pneg %p194
      $region58: #{tpu_custom_call.1} parent=55 // pred_check_branch
        %475 = sbr.rel (%p473) target = $region60
      $region59: #{tpu_custom_call.1} parent=55 // pred_region
        %s476 = smul.u32 4, %s19
        %p477 = scmp.lt.s32.totalorder %s476, 7
        %s478 = scalar_select %p477, %s476, 7
        %s479 = smul.addr %s478, 8
        %s480 = scalar_lea.vmem %s7, %s479
      $region60: #{tpu_custom_call.1} parent=55 // pred_fallthru
        _
    $region56: #{tpu_custom_call.1} parent=5 // pred_fallthru
      _
  $region6: #{tpu_custom_call.1} parent=0 // loop_footer
    %s17 = sadd.s32 1, %s13
  $region7: #{tpu_custom_call.1} parent=0 // loop_footer_branch
    %12 = sbr.rel target = $region3
  $region8: #{tpu_custom_call.1} parent=0 // loop_exit
    _

</llo_original>
